<compile_context>
chip_gen: v7x
topology: tpu7x:2x2x1
jax: 0.10.0
libtpu: 0.0.40
codegen_flags: <defaults>
</compile_context>

<pallas_src>
import functools

import jax
import jax.numpy as jnp
from jax.experimental import pallas as pl
from jax.experimental.pallas import tpu as pltpu


def _round_up(x, m):
    return ((x + m - 1) // m) * m


def _vmem_capacity_bytes():
    # Generation-aware VMEM query (128 MiB on v5e/v6e, 64 MiB per TC on v7x).
    try:
        return int(pltpu.get_tpu_info().vmem_capacity_bytes)
    except Exception:
        return 64 * 1024 * 1024          # conservative fallback (v7x per-TC)


def _num_tensorcores():
    # 2 TensorCores/chip only on v7x; v5e/v6e have 1 (an extra "parallel"
    # split there is just a second serial pass plus extra batch padding).
    try:
        kind = getattr(jax.devices()[0], "device_kind", "").lower()
        return 2 if "v7" in kind else 1
    except Exception:
        return 1


def _choose_block_b(batch, num_classes, in_itemsize, num_core_splits, vmem_cap):
    """Pick the batch-tile size from the real per-step VMEM working set."""
    budget = int(vmem_cap * 0.55)        # headroom for compiler scratch / slack
    per_row = (
        2 * 2 * num_classes * in_itemsize   # student+teacher, 2 pipeline bufs, native dtype
        + 7 * num_classes * 4               # ~peak live (tb, C) f32 on-chip intermediates
        + 2 * 128 * 4                       # label tile, lane-padded (tb,1)->(tb,128), 2 bufs
        + 2 * 128 * 4                       # two (tb,1)->(tb,128) f32 scratch accumulators
    )
    tb = budget // max(per_row, 1)
    tb = max(8, min(int(tb), 1024))
    tb = (tb // 8) * 8
    # Never tile coarser than what the (padded) per-core batch actually needs.
    rows_per_core = _round_up(pl.cdiv(batch, num_core_splits), 8)
    return max(8, min(tb, rows_per_core))


def _focal_distill_kernel(labels_ref, s_ref, t_ref,
                          focal_sum_ref, kl_sum_ref,
                          focal_acc, kl_acc,
                          *, gamma, temperature, focal_alpha,
                          ignore_index, batch_size):
    c = pl.program_id(0)          # core split  ("parallel")
    k = pl.program_id(1)          # batch tile  ("arbitrary", reduction)
    nk = pl.num_programs(1)

    @pl.when(k == 0)
    def _init():
        focal_acc[...] = jnp.zeros_like(focal_acc)
        kl_acc[...] = jnp.zeros_like(kl_acc)

    # HBM->VMEM DMA stays in the native dtype (bf16 stays bf16); widen on-chip.
    logits = s_ref[...].astype(jnp.float32)      # [TB, C] student logits
    labels = labels_ref[...]                     # [TB, 1] int32 hard labels
    TB, C = logits.shape
    inv_t = jnp.float32(1.0 / temperature)

    # ---------------- focal (hard-label) loss, per row ----------------
    m = jnp.max(logits, axis=-1, keepdims=True)
    shifted = logits - m
    s_exp_sum = jnp.sum(jnp.exp(shifted), axis=-1, keepdims=True)
    lse = jnp.log(s_exp_sum)
    cls_idx = jax.lax.broadcasted_iota(jnp.int32, (TB, C), 1)
    picked = jnp.sum(jnp.where(cls_idx == labels, shifted, 0.0),
                     axis=-1, keepdims=True)                     # logit[y] - m
    valid = (labels != ignore_index).astype(jnp.float32)
    # 0 for ignored / padded rows -> matches torch F.cross_entropy(reduction='none',
    # ignore_index=...) followed by .mean() over the full batch.
    ce = (lse - picked) * valid
    p_t = jnp.exp(-ce)
    one_minus_pt = jnp.maximum(1.0 - p_t, 0.0)
    if float(gamma) == 2.0:
        focal_pow = one_minus_pt * one_minus_pt
    else:
        focal_pow = jnp.power(one_minus_pt, jnp.float32(gamma))
    # TODO(synk): per-class focal alpha (class_weights list) gather not implemented;
    # only the scalar-alpha path of the torch FocalLoss is covered.
    focal_rows = jnp.float32(focal_alpha) * focal_pow * ce        # [TB, 1]

    # ---------------- soft (distillation) KL, per row ----------------
    # 1/T scaling commutes with the max shift: reuse `shifted`, no second
    # student max reduction, no student/T or teacher/T temporaries.
    sz = shifted * inv_t                                          # log-space student/T (shifted)
    s_sum = jnp.sum(jnp.exp(sz), axis=-1, keepdims=True)

    teacher = t_ref[...].astype(jnp.float32)                      # [TB, C] raw teacher logits
    tmax = jnp.max(teacher, axis=-1, keepdims=True)
    tz = (teacher - tmax) * inv_t                                 # log-space teacher/T (shifted)
    e_tz = jnp.exp(tz)
    t_sum = jnp.sum(e_tz, axis=-1, keepdims=True)

    # KL(softmax(teacher/T) || softmax(student/T)) per row, rewritten so the
    # softmax / log_softmax / xlogy-guard tiles are never materialized:
    #   sum_j p_j*(log p_j - log q_j)
    #     = (1/t_sum) * sum_j e_tz_j*(tz_j - sz_j) + log(s_sum) - log(t_sum)
    # (e_tz_j that underflow to 0 contribute exactly 0, matching torch xlogy).
    w = jnp.sum(e_tz * (tz - sz), axis=-1, keepdims=True)         # [TB, 1]
    kl_rows = (w * pl.reciprocal(t_sum, approx=False)
               + jnp.log(s_sum) - jnp.log(t_sum))

    # Zero rows that exist only due to tile padding (robust even if pad values
    # change).  Real rows with label==ignore_index still count in KL, like torch.
    row = (c * nk + k) * TB + jax.lax.broadcasted_iota(jnp.int32, (TB, 1), 0)
    kl_rows = jnp.where(row < batch_size, kl_rows, 0.0)

    # Defer the cross-sublane reduction: accumulate per-row partials only.
    focal_acc[...] += focal_rows
    kl_acc[...] += kl_rows

    @pl.when(k == nk - 1)
    def _finalize():
        focal_sum_ref[...] = jnp.sum(focal_acc[...]).reshape(1, 1, 1)
        kl_sum_ref[...] = jnp.sum(kl_acc[...]).reshape(1, 1, 1)


def focal_distillation_loss(student_logits, hard_labels, teacher_soft_labels,
                            *, alpha=0.5, gamma=2.0, temperature=4.0,
                            focal_alpha=1.0, ignore_index=-100,
                            block_b=None, num_core_splits=None):
    """Returns (total_loss, focal_hard_loss, soft_loss) as f32 scalars."""
    B, C = student_logits.shape
    if num_core_splits is None:
        num_core_splits = _num_tensorcores()
    nc = max(1, int(num_core_splits))

    vmem_cap = _vmem_capacity_bytes()
    if block_b is None:
        itemsize = max(jnp.dtype(student_logits.dtype).itemsize,
                       jnp.dtype(teacher_soft_labels.dtype).itemsize)
        block_b = _choose_block_b(B, C, itemsize, nc, vmem_cap)
    tb = max(8, (int(block_b) // 8) * 8)

    nt = pl.cdiv(pl.cdiv(B, tb), nc)        # batch tiles per core split
    b_pad = nc * nt * tb
    pad = b_pad - B

    labels = hard_labels.astype(jnp.int32)
    student = student_logits                 # no wrapper up-cast: DMA native dtype
    teacher = teacher_soft_labels
    if pad:
        # Zero logits + ignore_index labels (+ in-kernel pad mask) -> pads add 0.
        student = jnp.pad(student, ((0, pad), (0, 0)))
        teacher = jnp.pad(teacher, ((0, pad), (0, 0)))
        labels = jnp.pad(labels, ((0, pad),), constant_values=ignore_index)
    labels2d = labels.reshape(b_pad, 1)

    kernel = functools.partial(
        _focal_distill_kernel,
        gamma=float(gamma), temperature=float(temperature),
        focal_alpha=float(focal_alpha), ignore_index=int(ignore_index),
        batch_size=int(B))

    def tile_map(c, k):
        return (c * nt + k, 0)

    def out_map(c, k):
        return (c, 0, 0)

    grid_spec = pltpu.PrefetchScalarGridSpec(
        num_scalar_prefetch=0,
        grid=(nc, nt),
        in_specs=[
            pl.BlockSpec((tb, 1), tile_map),     # hard labels (int32)
            pl.BlockSpec((tb, C), tile_map),     # student logits (native dtype)
            pl.BlockSpec((tb, C), tile_map),     # teacher logits (native dtype)
        ],
        out_specs=(
            pl.BlockSpec((1, 1, 1), out_map),    # per-core focal partial sum
            pl.BlockSpec((1, 1, 1), out_map),    # per-core KL partial sum
        ),
        scratch_shapes=[
            pltpu.VMEM((tb, 1), jnp.float32),    # per-row focal partial sums
            pltpu.VMEM((tb, 1), jnp.float32),    # per-row KL partial sums
        ],
    )

    # Generation-aware limit: ~96 MiB on 128 MiB chips (v5e/v6e), ~48 MiB on v7x.
    vmem_limit = int(min(int(vmem_cap * 0.75), 96 * 1024 * 1024))

    focal_p, kl_p = pl.pallas_call(
        kernel,
        out_shape=(jax.ShapeDtypeStruct((nc, 1, 1), jnp.float32),
                   jax.ShapeDtypeStruct((nc, 1, 1), jnp.float32)),
        grid_spec=grid_spec,
        compiler_params=pltpu.CompilerParams(
            dimension_semantics=("parallel", "arbitrary"),
            vmem_limit_bytes=vmem_limit),
    )(labels2d, student, teacher)

    # Tiny cross-core reduction + normalization stays in XLA; both losses are
    # linear in the per-core partial sums, so this reproduces the module outputs.
    inv_b = jnp.float32(1.0 / B)
    hard = jnp.sum(focal_p) * inv_b
    soft = jnp.sum(kl_p) * inv_b * jnp.float32(temperature * temperature)
    total = jnp.float32(1.0 - alpha) * hard + jnp.float32(alpha) * soft
    return total, hard, soft


def _reference(student_logits, hard_labels, teacher_soft_labels,
               alpha=0.5, gamma=2.0, temperature=4.0):
    s = student_logits.astype(jnp.float32)
    t = teacher_soft_labels.astype(jnp.float32)
    logp = jax.nn.log_softmax(s, axis=-1)
    ce = -jnp.take_along_axis(logp, hard_labels[:, None], axis=-1)[:, 0]
    p_t = jnp.exp(-ce)
    loss_hard = jnp.mean((1.0 - p_t) ** gamma * ce)
    log_s = jax.nn.log_softmax(s / temperature, axis=-1)
    t_p = jax.nn.softmax(t / temperature, axis=-1)
    loss_soft = (jnp.sum(t_p * (jnp.log(t_p) - log_s))
                 / s.shape[0] * temperature ** 2)
    total = (1.0 - alpha) * loss_hard + alpha * loss_soft
    return total, loss_hard, loss_soft


if __name__ == "__main__":
    key = jax.random.PRNGKey(0)
    k1, k2, k3 = jax.random.split(key, 3)
    B, C = 10, 16     # non-tile-aligned batch exercises the padding path
    student_logits = jax.random.normal(k1, (B, C), dtype=jnp.float32)
    teacher_logits = jax.random.normal(k2, (B, C), dtype=jnp.float32)
    hard_labels = jax.random.randint(k3, (B,), 0, C, dtype=jnp.int32)

    total, hard, soft = focal_distillation_loss(
        student_logits, hard_labels, teacher_logits,
        alpha=0.5, gamma=2.0, temperature=4.0)
    jax.block_until_ready((total, hard, soft))

    ref_total, ref_hard, ref_soft = _reference(
        student_logits, hard_labels, teacher_logits,
        alpha=0.5, gamma=2.0, temperature=4.0)

    assert jnp.allclose(total, ref_total, atol=1e-5, rtol=1e-5), (total, ref_total)
    assert jnp.allclose(hard, ref_hard, atol=1e-5, rtol=1e-5), (hard, ref_hard)
    assert jnp.allclose(soft, ref_soft, atol=1e-5, rtol=1e-5), (soft, ref_soft)
    print("KERNEL_OK")
</pallas_src>

<mosaic_0001>
module attributes {stable_mosaic.version = 11 : i64} {
  func.func @_focal_distill_kernel(%arg0: i32, %arg1: i32, %arg2: memref<16x1xi32, #tpu.memory_space<vmem>>, %arg3: memref<16x16xf32, #tpu.memory_space<vmem>>, %arg4: memref<16x16xf32, #tpu.memory_space<vmem>>, %arg5: memref<1x1x1xf32, #tpu.memory_space<vmem>>, %arg6: memref<1x1x1xf32, #tpu.memory_space<vmem>>, %arg7: memref<16x1xf32, #tpu.memory_space<vmem>>, %arg8: memref<16x1xf32, #tpu.memory_space<vmem>>) attributes {dimension_semantics = [#tpu.dimension_semantics<parallel>, #tpu.dimension_semantics<arbitrary>], iteration_bounds = array<i64: 1, 1>, scalar_prefetch = 0 : i64, scratch_operands = 2 : i64, tpu.core_type = #tpu.core_type<tc>, window_params = [{transform_indices = @transform_0, window_bounds = array<i64: 16, 1>}, {transform_indices = @transform_1, window_bounds = array<i64: 16, 16>}, {transform_indices = @transform_2, window_bounds = array<i64: 16, 16>}, {transform_indices = @transform_3, window_bounds = array<i64: 1, 1, 1>}, {transform_indices = @transform_4, window_bounds = array<i64: 1, 1, 1>}]} {
    %c0_i32 = arith.constant 0 : i32
    %0 = arith.cmpi eq, %arg1, %c0_i32 : i32
    %1 = arith.extui %0 : i1 to i32
    %c0_i32_0 = arith.constant 0 : i32
    %2 = arith.cmpi ne, %1, %c0_i32_0 : i32
    scf.if %2 {
      %cst_30 = arith.constant 0.000000e+00 : f32
      %81 = vector.broadcast %cst_30 : f32 to vector<16x1xf32>
      %c0_31 = arith.constant 0 : index
      %c0_32 = arith.constant 0 : index
      %82 = vector.load %arg7[%c0_31, %c0_32] : memref<16x1xf32, #tpu.memory_space<vmem>>, vector<16x1xf32>
      tpu.vector_store %arg7[%c0_31, %c0_32], %81 {strides = array<i32>} : memref<16x1xf32, #tpu.memory_space<vmem>>, vector<16x1xf32>,
      %cst_33 = arith.constant 0.000000e+00 : f32
      %83 = vector.broadcast %cst_33 : f32 to vector<16x1xf32>
      %c0_34 = arith.constant 0 : index
      %c0_35 = arith.constant 0 : index
      %84 = vector.load %arg8[%c0_34, %c0_35] : memref<16x1xf32, #tpu.memory_space<vmem>>, vector<16x1xf32>
      tpu.vector_store %arg8[%c0_34, %c0_35], %83 {strides = array<i32>} : memref<16x1xf32, #tpu.memory_space<vmem>>, vector<16x1xf32>,
    } else {
    }
    %c0 = arith.constant 0 : index
    %c0_1 = arith.constant 0 : index
    %3 = vector.load %arg3[%c0, %c0_1] : memref<16x16xf32, #tpu.memory_space<vmem>>, vector<16x16xf32>
    %c0_2 = arith.constant 0 : index
    %c0_3 = arith.constant 0 : index
    %4 = vector.load %arg2[%c0_2, %c0_3] : memref<16x1xi32, #tpu.memory_space<vmem>>, vector<16x1xi32>
    %cst = arith.constant dense<0xFF800000> : vector<16xf32>
    %5 = vector.multi_reduction <maximumf>, %3, %cst [1] : vector<16x16xf32> to vector<16xf32>
    %6 = vector.shape_cast %5 : vector<16xf32> to vector<16x1xf32>
    %7 = vector.broadcast %6 : vector<16x1xf32> to vector<16x16xf32>
    %8 = arith.subf %3, %7 : vector<16x16xf32>
    %9 = math.exp %8 : vector<16x16xf32>
    %cst_4 = arith.constant dense<0.000000e+00> : vector<16xf32>
    %10 = vector.multi_reduction <add>, %9, %cst_4 [1] : vector<16x16xf32> to vector<16xf32>
    %11 = vector.shape_cast %10 : vector<16xf32> to vector<16x1xf32>
    %12 = math.log %11 : vector<16x1xf32>
    %13 = tpu.iota {dimensions = array<i32: 1>} : vector<16x16xi32>
    %14 = vector.broadcast %4 : vector<16x1xi32> to vector<16x16xi32>
    %15 = arith.cmpi eq, %13, %14 : vector<16x16xi32>
    %cst_5 = arith.constant 0.000000e+00 : f32
    %16 = vector.broadcast %cst_5 : f32 to vector<16x16xf32>
    %17 = arith.select %15, %8, %16 : vector<16x16xi1>, vector<16x16xf32>
    %cst_6 = arith.constant dense<0.000000e+00> : vector<16xf32>
    %18 = vector.multi_reduction <add>, %17, %cst_6 [1] : vector<16x16xf32> to vector<16xf32>
    %19 = vector.shape_cast %18 : vector<16xf32> to vector<16x1xf32>
    %c-100_i32 = arith.constant -100 : i32
    %20 = vector.broadcast %c-100_i32 : i32 to vector<16x1xi32>
    %21 = arith.cmpi ne, %4, %20 : vector<16x1xi32>
    %22 = arith.extui %21 : vector<16x1xi1> to vector<16x1xi32>
    %23 = arith.sitofp %22 : vector<16x1xi32> to vector<16x1xf32>
    %24 = arith.subf %12, %19 : vector<16x1xf32>
    %25 = arith.mulf %24, %23 : vector<16x1xf32>
    %cst_7 = arith.constant 0.000000e+00 : f32
    %26 = vector.broadcast %cst_7 : f32 to vector<16x1xf32>
    %27 = arith.subf %26, %25 : vector<16x1xf32>
    %28 = math.exp %27 : vector<16x1xf32>
    %cst_8 = arith.constant 1.000000e+00 : f32
    %29 = vector.broadcast %cst_8 : f32 to vector<16x1xf32>
    %30 = arith.subf %29, %28 : vector<16x1xf32>
    %cst_9 = arith.constant 0.000000e+00 : f32
    %31 = vector.broadcast %cst_9 : f32 to vector<16x1xf32>
    %32 = arith.maximumf %30, %31 : vector<16x1xf32>
    %33 = arith.mulf %32, %32 : vector<16x1xf32>
    %cst_10 = arith.constant 1.000000e+00 : f32
    %34 = vector.broadcast %cst_10 : f32 to vector<16x1xf32>
    %35 = arith.mulf %34, %33 : vector<16x1xf32>
    %36 = arith.mulf %35, %25 : vector<16x1xf32>
    %cst_11 = arith.constant 2.500000e-01 : f32
    %37 = vector.broadcast %cst_11 : f32 to vector<16x16xf32>
    %38 = arith.mulf %8, %37 : vector<16x16xf32>
    %39 = math.exp %38 : vector<16x16xf32>
    %cst_12 = arith.constant dense<0.000000e+00> : vector<16xf32>
    %40 = vector.multi_reduction <add>, %39, %cst_12 [1] : vector<16x16xf32> to vector<16xf32>
    %41 = vector.shape_cast %40 : vector<16xf32> to vector<16x1xf32>
    %c0_13 = arith.constant 0 : index
    %c0_14 = arith.constant 0 : index
    %42 = vector.load %arg4[%c0_13, %c0_14] : memref<16x16xf32, #tpu.memory_space<vmem>>, vector<16x16xf32>
    %cst_15 = arith.constant dense<0xFF800000> : vector<16xf32>
    %43 = vector.multi_reduction <maximumf>, %42, %cst_15 [1] : vector<16x16xf32> to vector<16xf32>
    %44 = vector.shape_cast %43 : vector<16xf32> to vector<16x1xf32>
    %45 = vector.broadcast %44 : vector<16x1xf32> to vector<16x16xf32>
    %46 = arith.subf %42, %45 : vector<16x16xf32>
    %cst_16 = arith.constant 2.500000e-01 : f32
    %47 = vector.broadcast %cst_16 : f32 to vector<16x16xf32>
    %48 = arith.mulf %46, %47 : vector<16x16xf32>
    %49 = math.exp %48 : vector<16x16xf32>
    %cst_17 = arith.constant dense<0.000000e+00> : vector<16xf32>
    %50 = vector.multi_reduction <add>, %49, %cst_17 [1] : vector<16x16xf32> to vector<16xf32>
    %51 = vector.shape_cast %50 : vector<16xf32> to vector<16x1xf32>
    %52 = arith.subf %48, %38 : vector<16x16xf32>
    %53 = arith.mulf %49, %52 : vector<16x16xf32>
    %cst_18 = arith.constant dense<0.000000e+00> : vector<16xf32>
    %54 = vector.multi_reduction <add>, %53, %cst_18 [1] : vector<16x16xf32> to vector<16xf32>
    %55 = vector.shape_cast %54 : vector<16xf32> to vector<16x1xf32>
    %56 = tpu.reciprocal %51 : vector<16x1xf32> -> vector<16x1xf32>
    %57 = arith.mulf %55, %56 : vector<16x1xf32>
    %58 = math.log %41 : vector<16x1xf32>
    %59 = arith.addf %57, %58 : vector<16x1xf32>
    %60 = math.log %51 : vector<16x1xf32>
    %61 = arith.subf %59, %60 : vector<16x1xf32>
    %c1_i32 = arith.constant 1 : i32
    %62 = arith.muli %arg0, %c1_i32 : i32
    %63 = arith.addi %62, %arg1 : i32
    %c16_i32 = arith.constant 16 : i32
    %64 = arith.muli %63, %c16_i32 : i32
    %65 = tpu.iota {dimensions = array<i32: 0>} : vector<16x1xi32>
    %66 = vector.broadcast %64 : i32 to vector<16x1xi32>
    %67 = arith.addi %66, %65 : vector<16x1xi32>
    %c10_i32 = arith.constant 10 : i32
    %68 = vector.broadcast %c10_i32 : i32 to vector<16x1xi32>
    %69 = arith.cmpi slt, %67, %68 : vector<16x1xi32>
    %cst_19 = arith.constant 0.000000e+00 : f32
    %70 = vector.broadcast %cst_19 : f32 to vector<16x1xf32>
    %71 = arith.select %69, %61, %70 : vector<16x1xi1>, vector<16x1xf32>
    %c0_20 = arith.constant 0 : index
    %c0_21 = arith.constant 0 : index
    %72 = vector.load %arg7[%c0_20, %c0_21] : memref<16x1xf32, #tpu.memory_space<vmem>>, vector<16x1xf32>
    %73 = arith.addf %72, %36 : vector<16x1xf32>
    %c0_22 = arith.constant 0 : index
    %c0_23 = arith.constant 0 : index
    %74 = vector.load %arg7[%c0_22, %c0_23] : memref<16x1xf32, #tpu.memory_space<vmem>>, vector<16x1xf32>
    tpu.vector_store %arg7[%c0_22, %c0_23], %73 {strides = array<i32>} : memref<16x1xf32, #tpu.memory_space<vmem>>, vector<16x1xf32>,
    %c0_24 = arith.constant 0 : index
    %c0_25 = arith.constant 0 : index
    %75 = vector.load %arg8[%c0_24, %c0_25] : memref<16x1xf32, #tpu.memory_space<vmem>>, vector<16x1xf32>
    %76 = arith.addf %75, %71 : vector<16x1xf32>
    %c0_26 = arith.constant 0 : index
    %c0_27 = arith.constant 0 : index
    %77 = vector.load %arg8[%c0_26, %c0_27] : memref<16x1xf32, #tpu.memory_space<vmem>>, vector<16x1xf32>
    tpu.vector_store %arg8[%c0_26, %c0_27], %76 {strides = array<i32>} : memref<16x1xf32, #tpu.memory_space<vmem>>, vector<16x1xf32>,
    %c0_i32_28 = arith.constant 0 : i32
    %78 = arith.cmpi eq, %arg1, %c0_i32_28 : i32
    %79 = arith.extui %78 : i1 to i32
    %c0_i32_29 = arith.constant 0 : i32
    %80 = arith.cmpi ne, %79, %c0_i32_29 : i32
    scf.if %80 {
      %c0_30 = arith.constant 0 : index
      %c0_31 = arith.constant 0 : index
      %81 = vector.load %arg7[%c0_30, %c0_31] : memref<16x1xf32, #tpu.memory_space<vmem>>, vector<16x1xf32>
      %82 = vector.shape_cast %81 : vector<16x1xf32> to vector<1x16x1xf32>
      %cst_32 = arith.constant dense<0.000000e+00> : vector<1xf32>
      %83 = vector.multi_reduction <add>, %82, %cst_32 [1, 2] : vector<1x16x1xf32> to vector<1xf32>
      %84 = vector.shape_cast %83 : vector<1xf32> to vector<1x1x1xf32>
      %85 = vector.extract %84[0, 0, 0] : f32 from vector<1x1x1xf32>
      %86 = vector.broadcast %85 : f32 to vector<1x1x1xf32>
      %c0_33 = arith.constant 0 : index
      %c0_34 = arith.constant 0 : index
      %c0_35 = arith.constant 0 : index
      %87 = vector.load %arg5[%c0_33, %c0_34, %c0_35] : memref<1x1x1xf32, #tpu.memory_space<vmem>>, vector<1x1x1xf32>
      tpu.vector_store %arg5[%c0_33, %c0_34, %c0_35], %86 {strides = array<i32>} : memref<1x1x1xf32, #tpu.memory_space<vmem>>, vector<1x1x1xf32>,
      %c0_36 = arith.constant 0 : index
      %c0_37 = arith.constant 0 : index
      %88 = vector.load %arg8[%c0_36, %c0_37] : memref<16x1xf32, #tpu.memory_space<vmem>>, vector<16x1xf32>
      %89 = vector.shape_cast %88 : vector<16x1xf32> to vector<1x16x1xf32>
      %cst_38 = arith.constant dense<0.000000e+00> : vector<1xf32>
      %90 = vector.multi_reduction <add>, %89, %cst_38 [1, 2] : vector<1x16x1xf32> to vector<1xf32>
      %91 = vector.shape_cast %90 : vector<1xf32> to vector<1x1x1xf32>
      %92 = vector.extract %91[0, 0, 0] : f32 from vector<1x1x1xf32>
      %93 = vector.broadcast %92 : f32 to vector<1x1x1xf32>
      %c0_39 = arith.constant 0 : index
      %c0_40 = arith.constant 0 : index
      %c0_41 = arith.constant 0 : index
      %94 = vector.load %arg6[%c0_39, %c0_40, %c0_41] : memref<1x1x1xf32, #tpu.memory_space<vmem>>, vector<1x1x1xf32>
      tpu.vector_store %arg6[%c0_39, %c0_40, %c0_41], %93 {strides = array<i32>} : memref<1x1x1xf32, #tpu.memory_space<vmem>>, vector<1x1x1xf32>,
    } else {
    }
    return
  }
  func.func @transform_0(%arg0: i32, %arg1: i32) -> (i32, i32) {
    %c1_i32 = arith.constant 1 : i32
    %0 = arith.muli %arg0, %c1_i32 : i32
    %1 = arith.addi %0, %arg1 : i32
    %c0_i32 = arith.constant 0 : i32
    %c0_i32_0 = arith.constant 0 : i32
    return %1, %c0_i32 : i32, i32
  }
  func.func @transform_1(%arg0: i32, %arg1: i32) -> (i32, i32) {
    %c1_i32 = arith.constant 1 : i32
    %0 = arith.muli %arg0, %c1_i32 : i32
    %1 = arith.addi %0, %arg1 : i32
    %c0_i32 = arith.constant 0 : i32
    %c0_i32_0 = arith.constant 0 : i32
    return %1, %c0_i32 : i32, i32
  }
  func.func @transform_2(%arg0: i32, %arg1: i32) -> (i32, i32) {
    %c1_i32 = arith.constant 1 : i32
    %0 = arith.muli %arg0, %c1_i32 : i32
    %1 = arith.addi %0, %arg1 : i32
    %c0_i32 = arith.constant 0 : i32
    %c0_i32_0 = arith.constant 0 : i32
    return %1, %c0_i32 : i32, i32
  }
  func.func @transform_3(%arg0: i32, %arg1: i32) -> (i32, i32, i32) {
    %c0_i32 = arith.constant 0 : i32
    %c0_i32_0 = arith.constant 0 : i32
    %c0_i32_1 = arith.constant 0 : i32
    return %arg0, %c0_i32, %c0_i32_0 : i32, i32, i32
  }
  func.func @transform_4(%arg0: i32, %arg1: i32) -> (i32, i32, i32) {
    %c0_i32 = arith.constant 0 : i32
    %c0_i32_0 = arith.constant 0 : i32
    %c0_i32_1 = arith.constant 0 : i32
    return %arg0, %c0_i32, %c0_i32_0 : i32, i32, i32
  }
}

</mosaic_0001>

<llo_original>
// kernel: tpu_custom_call.1
$region0: #{tpu_custom_call.1}
  #allocation0 [shape = 'u32[]', space=smem, size = 0x4, offset = 0x4, fixed_abs, tag = 'smem constant byte address 0x4 - core index']
  #allocation1 [shape = 'u32[144,128]{1,0:T(1,128)}', space=vmem, size = 0x12000, scoped, tag = 'internal scratch']
  #allocation2 [shape = 'f32[16,1]{1,0:T(8,128)}', space=vmem, size = 0x2000, scoped, tag = 'scratch operand']
  #allocation3 [shape = 'f32[16,1]{1,0:T(8,128)}', space=vmem, size = 0x2000, scoped, tag = 'scratch operand']
  %s0 = inlined_call_operand.vmem [shape: s32[16,1], index: 0, kind: input, shape index: {}]
  %s1 = inlined_call_operand.vmem [shape: f32[16,16], index: 1, kind: input, shape index: {}]
  %s2 = inlined_call_operand.hbm [shape: f32[16,16], index: 2, kind: input, shape index: {}]
  %s3 = inlined_call_operand.hbm [shape: f32[1,1,1], index: 3, kind: output, shape index: {0}]
  %s4 = inlined_call_operand.hbm [shape: f32[1,1,1], index: 4, kind: output, shape index: {1}]
  %5 = xla_tuple %s3, %s4
  %s6 = sld [smem:[#allocation0]]
  $region42: #{tpu_custom_call.1} parent=0
    _
  %s8 = ssub.s32 1, %s6
  %s9 = scalar_select 0, %s8, %s6
  $region1: #{tpu_custom_call.1} parent=0
    #allocation4 [shape = 'u8[8192]{0}', space=vmem, size = 0x2000, scoped, tag = 'input window, operand 2, single buffered']
    #allocation5 [shape = 's32[1]{0}', space=sflag, size = 0x4, scoped, tag = 'scoped memory for tpu_custom_call.1']
    #allocation6 [shape = 's32[1]{0}', space=sflag, size = 0x4, scoped, tag = 'scoped memory for tpu_custom_call.1']
    #allocation7 [shape = 'u8[512]{0}', space=vmem, size = 0x400, scoped, tag = 'output window, operand 0, single buffered']
    #allocation8 [shape = 'u8[512]{0}', space=vmem, size = 0x400, scoped, tag = 'output window, operand 1, single buffered']
    #allocation9 [shape = 's32[1]{0}', space=sflag, size = 0x4, scoped, tag = 'scoped memory for tpu_custom_call.1']
    %10 = vsyncpa [#allocation5], 0
    %11 = vsyncpa [#allocation6], 0
    %12 = vsyncpa [#allocation9], 0
    // Predicated region
    $region2: #{tpu_custom_call.1} parent=1 // pred_check
      _
    $region3: #{tpu_custom_call.1} parent=1 // pred_check_branch
      %14 = sbr.rel (0) target = $region5
    $region4: #{tpu_custom_call.1} parent=1 // pred_region
      %s15 = sadd.s32 0, 0
      %s16 = smul.u32 2, %s15
      %p17 = scmp.lt.s32.totalorder %s16, 1
      %s18 = scalar_select %p17, %s16, 1
      %s19 = smul.addr %s18, 8
      %s20 = scalar_lea.vmem %s0, %s19
      %s21 = sadd.s32 0, 0
      %s22 = smul.u32 2, %s21
    $region5: #{tpu_custom_call.1} parent=1 // pred_fallthru
      _
    // Predicated region
    $region6: #{tpu_custom_call.1} parent=1 // pred_check
      _
    $region7: #{tpu_custom_call.1} parent=1 // pred_check_branch
      %24 = sbr.rel (0) target = $region9
    $region8: #{tpu_custom_call.1} parent=1 // pred_region
      %s25 = sadd.s32 0, 0
      %s26 = smul.u32 2, %s25
      %p27 = scmp.lt.s32.totalorder %s26, 1
      %s28 = scalar_select %p27, %s26, 1
      %s29 = smul.addr %s28, 8
      %s30 = scalar_lea.vmem %s1, %s29
      %s31 = sadd.s32 0, 0
      %s32 = smul.u32 2, %s31
    $region9: #{tpu_custom_call.1} parent=1 // pred_fallthru
      _
    // Predicated region
    $region10: #{tpu_custom_call.1} parent=1 // pred_check
      _
    $region11: #{tpu_custom_call.1} parent=1 // pred_check_branch
      %34 = sbr.rel (0) target = $region13
    $region12: #{tpu_custom_call.1} parent=1 // pred_region
      %s35 = sadd.s32 0, 0
      %s36 = smul.u32 2, %s35
      %s38 = ssub.s32 256, 256
      %39 = vsyncadd [#allocation5], %s38
      %s40 = smul.addr %s36, 128
      %s41 = scalar_lea.hbm %s2, %s40
      %s42 = sshll.u32 [#allocation4], 4
      %s43 = int_to_ptr.vmem [resolvable:$true] %s42
      %48 = dma.hbm_to_vmem [thread:$0]  %s41, 256, %s43, [#allocation5], 128, 128, 8
    $region13: #{tpu_custom_call.1} parent=1 // pred_fallthru
      _
    // Predicated region
    $region14: #{tpu_custom_call.1} parent=1 // pred_check
      _
    $region15: #{tpu_custom_call.1} parent=1 // pred_check_branch
      %50 = sbr.rel (0) target = $region17
    $region16: #{tpu_custom_call.1} parent=1 // pred_region
      %51 = dma.done [#allocation5], 256
    $region17: #{tpu_custom_call.1} parent=1 // pred_fallthru
      _
    %s52 = sadd.s32 0, 0
    %s53 = smul.u32 2, %s52
    %p54 = scmp.lt.s32.totalorder %s53, 1
    %s55 = scalar_select %p54, %s53, 1
    %s56 = smul.addr %s55, 8
    %s57 = scalar_lea.vmem %s0, %s56
    %s58 = sadd.s32 0, 0
    %s59 = smul.u32 2, %s58
    %p60 = scmp.lt.s32.totalorder %s59, 1
    %s61 = scalar_select %p60, %s59, 1
    %s62 = smul.addr %s61, 8
    %s63 = scalar_lea.vmem %s1, %s62
    %s64 = sadd.s32 0, 0
    %s65 = smul.u32 2, %s64
    %p66 = scmp.lt.s32.totalorder %s65, 1
    %s67 = scalar_select %p66, %s65, 1
    %s68 = smul.addr %s67, 8
    %s69 = scalar_lea.vmem %s0, %s68
    %s70 = sadd.s32 0, 0
    %s71 = smul.u32 2, %s70
    %s72 = sadd.s32 0, 0
    %s73 = smul.u32 2, %s72
    %p74 = scmp.lt.s32.totalorder %s73, 1
    %s75 = scalar_select %p74, %s73, 1
    %s76 = smul.addr %s75, 8
    %s77 = scalar_lea.vmem %s1, %s76
    %s78 = sadd.s32 0, 0
    %s79 = smul.u32 2, %s78
    %s80 = sadd.s32 0, 0
    %s81 = smul.u32 2, %s80
    %p82 = scmp.eq.s32.totalorder 0, 0
    // Predicated region
    $region18: #{tpu_custom_call.1} parent=1 // pred_check
      %p83 = pneg %p82
    $region19: #{tpu_custom_call.1} parent=1 // pred_check_branch
      %85 = sbr.rel (%p83) target = $region21
    $region20: #{tpu_custom_call.1} parent=1 // pred_region
      %vm86 = vcmask 7168
      %87 = vst.msk [vmem:[#allocation2] sm:$0xff] %vm86, 0.0
      %88 = vst.msk [vmem:[#allocation2 + $0x8] sm:$0xff] %vm86, 0.0
      %89 = vst.msk [vmem:[#allocation3] sm:$0xff] %vm86, 0.0
      %90 = vst.msk [vmem:[#allocation3 + $0x8] sm:$0xff] %vm86, 0.0
    $region21: #{tpu_custom_call.1} parent=1 // pred_fallthru
      _
    %v91 = vld [vmem:[%s77] sm:$0xff]
    %v92 = vld [vmem:[%s77 + $0x8] sm:$0xff]
    %v93 = vld [vmem:[%s69] sm:$0xff]
    %v94 = vld [vmem:[%s69 + $0x8] sm:$0xff]
    %vm95 = vcmask 130048
    %v96 = vsel %vm95, %v91, -inf
    %97 = vmax.xlane.f32.xlu0 %v96
    %v98 = vpop.xlane.xlu0 %97
    %v99 = vsel %vm95, %v92, -inf
    %100 = vmax.xlane.f32.xlu0 %v99
    %v101 = vpop.xlane.xlu0 %100
    %v102 = vsub.f32 %v91, %v98
    %v103 = vsub.f32 %v92, %v101
    %v104 = vmul.f32 %v102, 1.442695
    %v105 = vpow.pop %v104
    %v106 = vmul.f32 %v103, 1.442695
    %v107 = vpow.pop %v106
    %v108 = vsel %vm95, %v105, 0.0
    %109 = vadd.xlane.f32.xlu0 %v108
    %v110 = vpop.xlane.xlu0 %109
    %v111 = vsel %vm95, %v107, 0.0
    %112 = vadd.xlane.f32.xlu0 %v111
    %v113 = vpop.xlane.xlu0 %112
    %v114 = vlog2.pop %v110
    %v115 = vmul.f32 %v114, 0.6931472
    %v116 = vlog2.pop %v113
    %v117 = vmul.f32 %v116, 0.6931472
    %v118 = vlaneseq
    %v119 = vand.u32 %v118, 127
    %120 = vset.pattern.permute.xlu0 0
    %121 = vperm.xlu0 %120, %v93
    %v122 = vpop.permute.xlu0 %121
    %123 = vset.pattern.permute.xlu0 0
    %124 = vperm.xlu0 %123, %v94
    %v125 = vpop.permute.xlu0 %124
    %vm126 = vcmp.eq.s32.totalorder %v119, %v122
    %vm127 = vcmp.eq.s32.totalorder %v119, %v125
    %v128 = vsel %vm126, %v102, 0.0
    %v129 = vsel %vm127, %v103, 0.0
    %v130 = vsel %vm95, %v128, 0.0
    %131 = vadd.xlane.f32.xlu0 %v130
    %v132 = vpop.xlane.xlu0 %131
    %v133 = vsel %vm95, %v129, 0.0
    %134 = vadd.xlane.f32.xlu0 %v133
    %v135 = vpop.xlane.xlu0 %134
    %vm136 = vcmp.ne.s32.totalorder %v93, 4294967196
    %vm137 = vcmp.ne.s32.totalorder %v94, 4294967196
    %v138 = vsel %vm136, 1, 0
    %v139 = vsel %vm137, 1, 0
    %v140 = vcvt.s32.f32 %v138
    %v141 = vcvt.s32.f32 %v139
    %v142 = vsub.f32 %v115, %v132
    %v143 = vsub.f32 %v117, %v135
    %v144 = vmul.f32 %v142, %v140
    %v145 = vmul.f32 %v143, %v141
    %v146 = vsub.f32 0.0, %v144
    %v147 = vsub.f32 0.0, %v145
    %v148 = vmul.f32 %v146, 1.442695
    %v149 = vpow.pop %v148
    %v150 = vmul.f32 %v147, 1.442695
    %v151 = vpow.pop %v150
    %v152 = vsub.f32 1.0, %v149
    %v153 = vsub.f32 1.0, %v151
    %v154 = vmax.f32 %v152, 0.0
    %v155 = vmax.f32 %v153, 0.0
    %v156 = vmul.f32 %v154, %v154
    %v157 = vmul.f32 %v155, %v155
    %v158 = vmul.f32 %v156, %v144
    %v159 = vmul.f32 %v157, %v145
    %v160 = vmul.f32 %v102, 0.25
    %v161 = vmul.f32 %v103, 0.25
    %v162 = vmul.f32 %v160, 1.442695
    %v163 = vpow.pop %v162
    %v164 = vmul.f32 %v161, 1.442695
    %v165 = vpow.pop %v164
    %v166 = vsel %vm95, %v163, 0.0
    %167 = vadd.xlane.f32.xlu0 %v166
    %v168 = vpop.xlane.xlu0 %167
    %v169 = vsel %vm95, %v165, 0.0
    %170 = vadd.xlane.f32.xlu0 %v169
    %v171 = vpop.xlane.xlu0 %170
    %v172 = vld [vmem:[#allocation4] sm:$0xff]
    %v173 = vld [vmem:[#allocation4 + $0x8] sm:$0xff]
    %v174 = vsel %vm95, %v172, -inf
    %175 = vmax.xlane.f32.xlu0 %v174
    %v176 = vpop.xlane.xlu0 %175
    %v177 = vsel %vm95, %v173, -inf
    %178 = vmax.xlane.f32.xlu0 %v177
    %v179 = vpop.xlane.xlu0 %178
    %v180 = vsub.f32 %v172, %v176
    %v181 = vsub.f32 %v173, %v179
    %v182 = vmul.f32 %v180, 0.25
    %v183 = vmul.f32 %v181, 0.25
    %v184 = vmul.f32 %v182, 1.442695
    %v185 = vpow.pop %v184
    %v186 = vmul.f32 %v183, 1.442695
    %v187 = vpow.pop %v186
    %v188 = vsel %vm95, %v185, 0.0
    %189 = vadd.xlane.f32.xlu0 %v188
    %v190 = vpop.xlane.xlu0 %189
    %v191 = vsel %vm95, %v187, 0.0
    %192 = vadd.xlane.f32.xlu0 %v191
    %v193 = vpop.xlane.xlu0 %192
    %v194 = vsub.f32 %v182, %v160
    %v195 = vsub.f32 %v183, %v161
    %v196 = vmul.f32 %v185, %v194
    %v197 = vmul.f32 %v187, %v195
    %v198 = vsel %vm95, %v196, 0.0
    %199 = vadd.xlane.f32.xlu0 %v198
    %v200 = vpop.xlane.xlu0 %199
    %v201 = vsel %vm95, %v197, 0.0
    %202 = vadd.xlane.f32.xlu0 %v201
    %v203 = vpop.xlane.xlu0 %202
    %v204 = vrcp.pop %v190
    %v205 = vrcp.pop %v193
    %v206 = vmul.f32 %v200, %v204
    %v207 = vmul.f32 %v203, %v205
    %v208 = vlog2.pop %v168
    %v209 = vmul.f32 %v208, 0.6931472
    %v210 = vlog2.pop %v171
    %v211 = vmul.f32 %v210, 0.6931472
    %v212 = vadd.f32 %v206, %v209
    %v213 = vadd.f32 %v207, %v211
    %v214 = vlog2.pop %v190
    %v215 = vmul.f32 %v214, 0.6931472
    %v216 = vlog2.pop %v193
    %v217 = vmul.f32 %v216, 0.6931472
    %v218 = vsub.f32 %v212, %v215
    %v219 = vsub.f32 %v213, %v217
    %s220 = sadd.s32 0, 0
    %s221 = smul.u32 %s220, 16
    %v222 = vlaneseq
    %v223 = vshrl.u32 %v222, 7
    %v224 = vadd.s32 %v223, 8
    %v225 = vstv %s221
    %v226 = vadd.s32 %v225, %v223
    %v227 = vadd.s32 %v225, %v224
    %vm228 = vcmp.lt.s32.totalorder %v226, 10
    %vm229 = vcmp.lt.s32.totalorder %v227, 10
    %v230 = vsel %vm228, %v218, 0.0
    %v231 = vsel %vm229, %v219, 0.0
    %v232 = vld [vmem:[#allocation2] sm:$0xff]
    %v233 = vld [vmem:[#allocation2 + $0x8] sm:$0xff]
    %v234 = vadd.f32 %v232, %v158
    %v235 = vadd.f32 %v233, %v159
    %vm236 = vcmask 7168
    %237 = vst.msk [vmem:[#allocation2] sm:$0xff] %vm236, %v234
    %238 = vst.msk [vmem:[#allocation2 + $0x8] sm:$0xff] %vm236, %v235
    %v239 = vld [vmem:[#allocation3] sm:$0xff]
    %v240 = vld [vmem:[#allocation3 + $0x8] sm:$0xff]
    %v241 = vadd.f32 %v239, %v230
    %v242 = vadd.f32 %v240, %v231
    %243 = vst.msk [vmem:[#allocation3] sm:$0xff] %vm236, %v241
    %244 = vst.msk [vmem:[#allocation3 + $0x8] sm:$0xff] %vm236, %v242
    // Predicated region
    $region22: #{tpu_custom_call.1} parent=1 // pred_check
      %p245 = pneg %p82
    $region23: #{tpu_custom_call.1} parent=1 // pred_check_branch
      %247 = sbr.rel (%p245) target = $region25
    $region24: #{tpu_custom_call.1} parent=1 // pred_region
      %v248 = vld [vmem:[#allocation2] sm:$0xff]
      %v249 = vld [vmem:[#allocation2 + $0x8] sm:$0xff]
      %v250 = vsel %vm236, %v248, 0.0
      %v251 = vsel %vm236, %v249, 0.0
      %v252 = vadd.f32 %v250, %v251
      %253 = vadd.xlane.f32.xlu0 %v252
      %v254 = vpop.xlane.xlu0 %253
      %v255 = vrot.slane %v254, 4
      %v256 = vadd.f32 %v254, %v255
      %v257 = vrot.slane %v256, 2
      %v258 = vadd.f32 %v256, %v257
      %v259 = vrot.slane %v258, 1
      %v260 = vadd.f32 %v258, %v259
      %s261 = vtos %v260
      %v262 = vstv %s261
      %vm263 = vcmask 0
      %264 = vst.msk [vmem:[#allocation7] sm:$0x1] %vm263, %v262
      %v265 = vld [vmem:[#allocation3] sm:$0xff]
      %v266 = vld [vmem:[#allocation3 + $0x8] sm:$0xff]
      %v267 = vsel %vm236, %v265, 0.0
      %v268 = vsel %vm236, %v266, 0.0
      %v269 = vadd.f32 %v267, %v268
      %270 = vadd.xlane.f32.xlu0 %v269
      %v271 = vpop.xlane.xlu0 %270
      %v272 = vrot.slane %v271, 4
      %v273 = vadd.f32 %v271, %v272
      %v274 = vrot.slane %v273, 2
      %v275 = vadd.f32 %v273, %v274
      %v276 = vrot.slane %v275, 1
      %v277 = vadd.f32 %v275, %v276
      %s278 = vtos %v277
      %v279 = vstv %s278
      %280 = vst.msk [vmem:[#allocation8] sm:$0x1] %vm263, %v279
    $region25: #{tpu_custom_call.1} parent=1 // pred_fallthru
      _
    // Predicated region
    $region26: #{tpu_custom_call.1} parent=1 // pred_check
      _
    $region27: #{tpu_custom_call.1} parent=1 // pred_check_branch
      %282 = sbr.rel (0) target = $region29
    $region28: #{tpu_custom_call.1} parent=1 // pred_region
      %s284 = ssub.s32 16, 16
      %285 = vsyncadd [#allocation6], %s284
      %s287 = sshll.u32 [#allocation7], 4
      %s288 = int_to_ptr.vmem [resolvable:$true] %s287
      %290 = dma.vmem_to_hbm [thread:$0]  %s288, 16, %s3, [#allocation6]
    $region29: #{tpu_custom_call.1} parent=1 // pred_fallthru
      _
    // Predicated region
    $region30: #{tpu_custom_call.1} parent=1 // pred_check
      _
    $region31: #{tpu_custom_call.1} parent=1 // pred_check_branch
      %292 = sbr.rel (0) target = $region33
    $region32: #{tpu_custom_call.1} parent=1 // pred_region
      %s294 = ssub.s32 16, 16
      %295 = vsyncadd [#allocation9], %s294
      %s297 = sshll.u32 [#allocation8], 4
      %s298 = int_to_ptr.vmem [resolvable:$true] %s297
      %300 = dma.vmem_to_hbm [thread:$0]  %s298, 16, %s4, [#allocation9]
    $region33: #{tpu_custom_call.1} parent=1 // pred_fallthru
      _
    // Predicated region
    $region34: #{tpu_custom_call.1} parent=1 // pred_check
      _
    $region35: #{tpu_custom_call.1} parent=1 // pred_check_branch
      %302 = sbr.rel (0) target = $region37
    $region36: #{tpu_custom_call.1} parent=1 // pred_region
      %303 = dma.done [#allocation6], 16
    $region37: #{tpu_custom_call.1} parent=1 // pred_fallthru
      _
    // Predicated region
    $region38: #{tpu_custom_call.1} parent=1 // pred_check
      _
    $region39: #{tpu_custom_call.1} parent=1 // pred_check_branch
      %305 = sbr.rel (0) target = $region41
    $region40: #{tpu_custom_call.1} parent=1 // pred_region
      %306 = dma.done [#allocation9], 16
    $region41: #{tpu_custom_call.1} parent=1 // pred_fallthru
      _
    %307 = vsyncpa [#allocation5], 1
    %308 = vsyncpa [#allocation6], 1
    %309 = vsyncpa [#allocation9], 1

</llo_original>
